<compile_context>
chip_gen: v7x
topology: tpu7x:2x2x1
jax: 0.10.0
libtpu: 0.0.40
codegen_flags: <defaults>
</compile_context>

<pallas_src>
import functools

import jax
import jax.numpy as jnp
import numpy as np
from jax.experimental import pallas as pl
from jax.experimental.pallas import tpu as pltpu


def _cosattn_kernel(q_ref, k_ref, attn_ref, out_ref, *, shared_query):
    """One grid step: a block of Bblk batches.

    q_ref:    (D, L) bf16 (shared, resident) or (Bblk, L, D) bf16 (per-batch),
              already L2-normalized in the wrapper.
    k_ref:    (Bblk, L, D)   raw keys (streamed)
    attn_ref: (Bblk, L, L)   per-batch softmax weights (streamed out)
    out_ref:  (1, L, D) f32  partial batch-sum, resident across the inner axis
    """
    i = pl.program_id(1)

    @pl.when(i == 0)
    def _():
        out_ref[...] = jnp.zeros_like(out_ref)

    # eps clamp on the squared norm: zero rows -> zero scores (the PyTorch
    # reference would produce NaN/Inf there).  Also makes zero batch-padding
    # contribute exactly 0 to the output sum.
    eps = jnp.float32(1e-12)

    k_raw = k_ref[...]                                   # (Bblk, L, D), input dtype
    bb, L, D = k_raw.shape
    kf = k_raw.astype(jnp.float32)
    k_norm_bf = (kf * jax.lax.rsqrt(
        jnp.sum(kf * kf, axis=-1, keepdims=True) + eps)).astype(jnp.bfloat16)

    if shared_query:
        # Single large 2-D MXU contraction: (Bblk*L, D) @ (D, L) -> (Bblk*L, L).
        # The shared query block stays resident in VMEM (index_map -> (0, 0)).
        scores = jnp.dot(k_norm_bf.reshape(bb * L, D), q_ref[...],
                         preferred_element_type=jnp.float32).reshape(bb, L, L)
    else:
        # Per-batch query (already normalized + bf16 in the wrapper).
        scores = jnp.einsum("bld,bmd->blm", k_norm_bf, q_ref[...],
                            preferred_element_type=jnp.float32)  # (Bblk, L, L)

    # Softmax over the last axis.  Cosine scores are bounded in [-1, 1], so
    # exp cannot overflow -> no max-subtraction (saves an XLU row-reduce and a
    # broadcast subtract over the (Bblk, L, L) tile every step).
    e = jnp.exp(scores)
    denom = jnp.sum(e, axis=-1, keepdims=True)
    w = e * pl.reciprocal(denom, approx=True)            # EUP slot, frees VALU

    attn_ref[...] = w.astype(attn_ref.dtype)

    # Second contraction with the batch reduction fused into the MXU
    # accumulation:  acc[l, d] = sum_b sum_m w[b, l, m] * keys[b, m, d].
    # Static unrolled loop over the small Bblk; no (Bblk, L, D) f32
    # intermediate and no cross-sublane batch reduce.
    k_mm = k_raw if k_raw.dtype == jnp.bfloat16 else k_raw.astype(jnp.bfloat16)
    w_bf = w.astype(jnp.bfloat16)
    acc = jnp.zeros((L, D), jnp.float32)
    for b in range(bb):
        acc = acc + jnp.dot(w_bf[b], k_mm[b], preferred_element_type=jnp.float32)
    out_ref[...] += acc[None]


def _num_tensorcores():
    """v7x has 2 TensorCores per chip; v5e/v6e have 1."""
    try:
        kind = (jax.devices()[0].device_kind or "").lower()
        if "v7" in kind:
            return 2
    except Exception:
        pass
    return 1


def _vmem_capacity_bytes():
    try:
        cap = getattr(pltpu.get_tpu_info(), "vmem_capacity_bytes", None)
        if cap:
            return int(cap)
    except Exception:
        pass
    return 128 * 1024 * 1024


def _per_step_vmem_bytes(bblk, L, D, k_item, attn_item, shared_query):
    q_elems = (D * L) if shared_query else (bblk * L * D)
    return (2 * bblk * L * D * k_item          # keys stream (double buffered)
            + 2 * q_elems * 2                  # bf16 query block(s)
            + 2 * bblk * L * L * attn_item     # attn writeback (double buffered)
            + 2 * L * D * 4                    # resident f32 partial sum
            + 4 * bblk * L * L * 4             # f32 scores / exp / weights
            + 3 * bblk * L * D * 4)            # f32 / bf16 key copies


def cosine_similarity_attention(query, keys, w_dh, bias):
    """query: (1, L, D) or (B, L, D); keys: (B, L, D); w_dh: (D, H); bias: (H,).

    Returns (x, attention_weights) matching the PyTorch module:
      x: (L, H) float32, attention_weights: (B, L, L) in keys.dtype.
    """
    B, L, D = keys.shape
    Bq = query.shape[0]
    if Bq not in (1, B):
        raise ValueError(f"query batch {Bq} must be 1 or {B}")
    shared_query = Bq == 1

    # Pre-normalize the query ONCE in the wrapper (plain XLA): hoists the
    # per-step rsqrt/mul/cast off the resident shared-query block.
    eps = jnp.float32(1e-12)
    qf = query.astype(jnp.float32)
    qn = (qf * jax.lax.rsqrt(jnp.sum(qf * qf, axis=-1, keepdims=True) + eps)
          ).astype(jnp.bfloat16)

    # Generation-aware tiling / VMEM budget.
    n_par = _num_tensorcores()
    capacity = _vmem_capacity_bytes()
    budget = capacity // 2                     # headroom for compiler scratch
    k_item = jnp.dtype(keys.dtype).itemsize
    bblk = 1
    for cand in (8, 4, 2, 1):
        if cand <= B and _per_step_vmem_bytes(cand, L, D, k_item, k_item,
                                              shared_query) <= budget:
            bblk = cand
            break
    # TODO(synk): for large L, also tile the key-row (l) axis as an extra grid
    # dimension (softmax is over m, so l tiles freely) and pad the attn last
    # dim to a multiple of 128 for lane-dense writeback.

    nb = -(-B // bblk)                         # ceil(B / bblk)
    n_par = min(n_par, nb)
    nb_pad = n_par * (-(-nb // n_par))         # round up so both v7x cores work
    n_inner = nb_pad // n_par
    B_pad = nb_pad * bblk

    keys_p = keys
    if shared_query:
        q_in = jnp.transpose(qn[0])            # (D, L) bf16, resident block
    else:
        q_in = qn                              # (B, L, D) bf16
    if B_pad > B:
        pad = ((0, B_pad - B), (0, 0), (0, 0))
        keys_p = jnp.pad(keys, pad)            # zero keys contribute 0 to out
        if not shared_query:
            q_in = jnp.pad(q_in, pad)

    per_step = _per_step_vmem_bytes(bblk, L, D, k_item, k_item, shared_query)
    cp_kwargs = dict(dimension_semantics=("parallel", "arbitrary"))
    if per_step > 12 * 1024 * 1024:            # above the smallest default (v5e 16 MiB)
        cp_kwargs["vmem_limit_bytes"] = min(int(per_step * 1.5),
                                            int(0.9 * capacity))

    if shared_query:
        q_spec = pl.BlockSpec((D, L), lambda p, i: (0, 0))         # resident
    else:
        q_spec = pl.BlockSpec((bblk, L, D),
                              lambda p, i: (p * n_inner + i, 0, 0))
    k_spec = pl.BlockSpec((bblk, L, D), lambda p, i: (p * n_inner + i, 0, 0))
    attn_spec = pl.BlockSpec((bblk, L, L), lambda p, i: (p * n_inner + i, 0, 0))
    out_spec = pl.BlockSpec((1, L, D), lambda p, i: (p, 0, 0))

    kernel = functools.partial(_cosattn_kernel, shared_query=shared_query)

    attn_pad, partials = pl.pallas_call(
        kernel,
        out_shape=(
            jax.ShapeDtypeStruct((B_pad, L, L), keys.dtype),   # attention weights
            jax.ShapeDtypeStruct((n_par, L, D), jnp.float32),  # per-core partial sums
        ),
        grid_spec=pltpu.PrefetchScalarGridSpec(
            num_scalar_prefetch=0,
            grid=(n_par, n_inner),
            in_specs=[q_spec, k_spec],
            out_specs=[attn_spec, out_spec],
        ),
        compiler_params=pltpu.CompilerParams(**cp_kwargs),
    )(q_in, keys_p)

    attn = attn_pad if B_pad == B else attn_pad[:B]
    out = jnp.sum(partials, axis=0)                            # (L, D) f32

    # fc + relu epilogue hoisted out of the kernel (plain XLA), kept in f32.
    x = jax.nn.relu(out @ w_dh.astype(jnp.float32) + bias.astype(jnp.float32))
    return x, attn


def _reference(query, keys, w_dh, bias):
    B = keys.shape[0]
    if query.shape[0] == 1:
        query = jnp.broadcast_to(query, (B,) + query.shape[1:])
    qn = query / jnp.linalg.norm(query, axis=-1, keepdims=True)
    kn = keys / jnp.linalg.norm(keys, axis=-1, keepdims=True)
    scores = jnp.einsum("bld,bmd->blm", kn, qn)
    weights = jax.nn.softmax(scores, axis=-1)
    out = jnp.sum(jnp.einsum("blm,bmd->bld", weights, keys), axis=0)
    x = jax.nn.relu(out @ w_dh + bias)
    return x, weights


if __name__ == "__main__":
    B, L, D, H = 2, 8, 16, 32
    key = jax.random.PRNGKey(0)
    k1, k2, k3, k4 = jax.random.split(key, 4)

    # Bq == 1 exercises the module's expand path (resident shared-query block).
    query1 = jax.random.normal(k1, (1, L, D), dtype=jnp.float32)
    keys = jax.random.normal(k2, (B, L, D), dtype=jnp.float32)

    # fc parameters (xavier-normal-style init), stored transposed as (D, H).
    std = float(np.sqrt(2.0 / (D + H)))
    w_dh = jax.random.normal(k3, (D, H), dtype=jnp.float32) * std
    bound = 1.0 / float(np.sqrt(D))
    bias = jax.random.uniform(k4, (H,), dtype=jnp.float32, minval=-bound, maxval=bound)

    # bf16 MXU operands + approx reciprocal -> loosened tolerance (intentional
    # precision/speed tradeoff; f32 accumulation keeps errors ~1e-3).
    RTOL = ATOL = 2e-2

    # Shared-query path (Bq == 1).
    x, attn = cosine_similarity_attention(query1, keys, w_dh, bias)
    jax.block_until_ready((x, attn))
    x_ref, attn_ref = _reference(query1, keys, w_dh, bias)
    np.testing.assert_allclose(np.asarray(x), np.asarray(x_ref), rtol=RTOL, atol=ATOL)
    np.testing.assert_allclose(np.asarray(attn), np.asarray(attn_ref), rtol=RTOL, atol=ATOL)

    # Per-batch query path (Bq == B).
    queryB = jax.random.normal(jax.random.PRNGKey(1), (B, L, D), dtype=jnp.float32)
    x2, attn2 = cosine_similarity_attention(queryB, keys, w_dh, bias)
    jax.block_until_ready((x2, attn2))
    x2_ref, attn2_ref = _reference(queryB, keys, w_dh, bias)
    np.testing.assert_allclose(np.asarray(x2), np.asarray(x2_ref), rtol=RTOL, atol=ATOL)
    np.testing.assert_allclose(np.asarray(attn2), np.asarray(attn2_ref), rtol=RTOL, atol=ATOL)

    print("KERNEL_OK")
</pallas_src>

<mosaic_0001>
module attributes {stable_mosaic.version = 11 : i64} {
  func.func @_cosattn_kernel(%arg0: i32, %arg1: i32, %arg2: memref<16x8xbf16, #tpu.memory_space<vmem>>, %arg3: memref<2x8x16xf32, #tpu.memory_space<vmem>>, %arg4: memref<2x8x8xf32, #tpu.memory_space<vmem>>, %arg5: memref<1x8x16xf32, #tpu.memory_space<vmem>>) attributes {dimension_semantics = [#tpu.dimension_semantics<parallel>, #tpu.dimension_semantics<arbitrary>], iteration_bounds = array<i64: 1, 1>, scalar_prefetch = 0 : i64, scratch_operands = 0 : i64, tpu.core_type = #tpu.core_type<tc>, window_params = [{pipeline_mode = #tpu.pipeline_mode<synchronous>, transform_indices = @transform_0, window_bounds = array<i64: 16, 8>}, {transform_indices = @transform_1, window_bounds = array<i64: 2, 8, 16>}, {transform_indices = @transform_2, window_bounds = array<i64: 2, 8, 8>}, {transform_indices = @transform_3, window_bounds = array<i64: 1, 8, 16>}]} {
    %c0_i32 = arith.constant 0 : i32
    %0 = arith.cmpi eq, %arg1, %c0_i32 : i32
    %1 = arith.extui %0 : i1 to i32
    %c0_i32_0 = arith.constant 0 : i32
    %2 = arith.cmpi ne, %1, %c0_i32_0 : i32
    scf.if %2 {
      %cst_20 = arith.constant 0.000000e+00 : f32
      %43 = vector.broadcast %cst_20 : f32 to vector<1x8x16xf32>
      %c0_21 = arith.constant 0 : index
      %c0_22 = arith.constant 0 : index
      %c0_23 = arith.constant 0 : index
      %44 = vector.load %arg5[%c0_21, %c0_22, %c0_23] : memref<1x8x16xf32, #tpu.memory_space<vmem>>, vector<1x8x16xf32>
      tpu.vector_store %arg5[%c0_21, %c0_22, %c0_23], %43 {strides = array<i32>} : memref<1x8x16xf32, #tpu.memory_space<vmem>>, vector<1x8x16xf32>,
    } else {
    }
    %c0 = arith.constant 0 : index
    %c0_1 = arith.constant 0 : index
    %c0_2 = arith.constant 0 : index
    %3 = vector.load %arg3[%c0, %c0_1, %c0_2] : memref<2x8x16xf32, #tpu.memory_space<vmem>>, vector<2x8x16xf32>
    %4 = arith.mulf %3, %3 : vector<2x8x16xf32>
    %cst = arith.constant dense<0.000000e+00> : vector<2x8xf32>
    %5 = vector.multi_reduction <add>, %4, %cst [2] : vector<2x8x16xf32> to vector<2x8xf32>
    %6 = vector.shape_cast %5 : vector<2x8xf32> to vector<2x8x1xf32>
    %cst_3 = arith.constant 9.99999996E-13 : f32
    %7 = vector.broadcast %cst_3 : f32 to vector<2x8x1xf32>
    %8 = arith.addf %6, %7 : vector<2x8x1xf32>
    %9 = math.rsqrt %8 : vector<2x8x1xf32>
    %10 = vector.broadcast %9 : vector<2x8x1xf32> to vector<2x8x16xf32>
    %11 = arith.mulf %3, %10 : vector<2x8x16xf32>
    %12 = arith.truncf %11 : vector<2x8x16xf32> to vector<2x8x16xbf16>
    %13 = vector.shape_cast %12 : vector<2x8x16xbf16> to vector<16x16xbf16>
    %c0_4 = arith.constant 0 : index
    %c0_5 = arith.constant 0 : index
    %14 = vector.load %arg2[%c0_4, %c0_5] : memref<16x8xbf16, #tpu.memory_space<vmem>>, vector<16x8xbf16>
    %cst_6 = arith.constant dense<0.000000e+00> : vector<16x8xf32>
    %15 = tpu.matmul %13, %14, %cst_6 {dimension_numbers = #tpu.dot_dimension_numbers<[1], [0], [0], [1], [0, 0, 1, 1], [], []>} : vector<16x16xbf16>, vector<16x8xbf16>, vector<16x8xf32> -> vector<16x8xf32>
    %16 = vector.shape_cast %15 : vector<16x8xf32> to vector<2x8x8xf32>
    %17 = math.exp %16 : vector<2x8x8xf32>
    %cst_7 = arith.constant dense<0.000000e+00> : vector<2x8xf32>
    %18 = vector.multi_reduction <add>, %17, %cst_7 [2] : vector<2x8x8xf32> to vector<2x8xf32>
    %19 = vector.shape_cast %18 : vector<2x8xf32> to vector<2x8x1xf32>
    %20 = tpu.reciprocal %19 {approx = true} : vector<2x8x1xf32> -> vector<2x8x1xf32>
    %21 = vector.broadcast %20 : vector<2x8x1xf32> to vector<2x8x8xf32>
    %22 = arith.mulf %17, %21 : vector<2x8x8xf32>
    %c0_8 = arith.constant 0 : index
    %c0_9 = arith.constant 0 : index
    %c0_10 = arith.constant 0 : index
    %23 = vector.load %arg4[%c0_8, %c0_9, %c0_10] : memref<2x8x8xf32, #tpu.memory_space<vmem>>, vector<2x8x8xf32>
    tpu.vector_store %arg4[%c0_8, %c0_9, %c0_10], %22 {strides = array<i32>} : memref<2x8x8xf32, #tpu.memory_space<vmem>>, vector<2x8x8xf32>,
    %24 = arith.truncf %3 : vector<2x8x16xf32> to vector<2x8x16xbf16>
    %25 = arith.truncf %22 : vector<2x8x8xf32> to vector<2x8x8xbf16>
    %cst_11 = arith.constant 0.000000e+00 : f32
    %26 = vector.broadcast %cst_11 : f32 to vector<8x16xf32>
    %27 = vector.extract_strided_slice %25 {offsets = [0, 0, 0], sizes = [1, 8, 8], strides = [1, 1, 1]} : vector<2x8x8xbf16> to vector<1x8x8xbf16>
    %28 = vector.shape_cast %27 : vector<1x8x8xbf16> to vector<8x8xbf16>
    %29 = vector.extract_strided_slice %24 {offsets = [0, 0, 0], sizes = [1, 8, 16], strides = [1, 1, 1]} : vector<2x8x16xbf16> to vector<1x8x16xbf16>
    %30 = vector.shape_cast %29 : vector<1x8x16xbf16> to vector<8x16xbf16>
    %cst_12 = arith.constant dense<0.000000e+00> : vector<8x16xf32>
    %31 = tpu.matmul %28, %30, %cst_12 {dimension_numbers = #tpu.dot_dimension_numbers<[1], [0], [0], [1], [0, 0, 1, 1], [], []>} : vector<8x8xbf16>, vector<8x16xbf16>, vector<8x16xf32> -> vector<8x16xf32>
    %32 = arith.addf %26, %31 : vector<8x16xf32>
    %33 = vector.extract_strided_slice %25 {offsets = [1, 0, 0], sizes = [1, 8, 8], strides = [1, 1, 1]} : vector<2x8x8xbf16> to vector<1x8x8xbf16>
    %34 = vector.shape_cast %33 : vector<1x8x8xbf16> to vector<8x8xbf16>
    %35 = vector.extract_strided_slice %24 {offsets = [1, 0, 0], sizes = [1, 8, 16], strides = [1, 1, 1]} : vector<2x8x16xbf16> to vector<1x8x16xbf16>
    %36 = vector.shape_cast %35 : vector<1x8x16xbf16> to vector<8x16xbf16>
    %cst_13 = arith.constant dense<0.000000e+00> : vector<8x16xf32>
    %37 = tpu.matmul %34, %36, %cst_13 {dimension_numbers = #tpu.dot_dimension_numbers<[1], [0], [0], [1], [0, 0, 1, 1], [], []>} : vector<8x8xbf16>, vector<8x16xbf16>, vector<8x16xf32> -> vector<8x16xf32>
    %38 = arith.addf %32, %37 : vector<8x16xf32>
    %c0_14 = arith.constant 0 : index
    %c0_15 = arith.constant 0 : index
    %c0_16 = arith.constant 0 : index
    %39 = vector.load %arg5[%c0_14, %c0_15, %c0_16] : memref<1x8x16xf32, #tpu.memory_space<vmem>>, vector<1x8x16xf32>
    %40 = vector.shape_cast %38 : vector<8x16xf32> to vector<1x8x16xf32>
    %41 = arith.addf %39, %40 : vector<1x8x16xf32>
    %c0_17 = arith.constant 0 : index
    %c0_18 = arith.constant 0 : index
    %c0_19 = arith.constant 0 : index
    %42 = vector.load %arg5[%c0_17, %c0_18, %c0_19] : memref<1x8x16xf32, #tpu.memory_space<vmem>>, vector<1x8x16xf32>
    tpu.vector_store %arg5[%c0_17, %c0_18, %c0_19], %41 {strides = array<i32>} : memref<1x8x16xf32, #tpu.memory_space<vmem>>, vector<1x8x16xf32>,
    return
  }
  func.func @transform_0(%arg0: i32, %arg1: i32) -> (i32, i32) {
    %c0_i32 = arith.constant 0 : i32
    %c0_i32_0 = arith.constant 0 : i32
    %c0_i32_1 = arith.constant 0 : i32
    return %c0_i32, %c0_i32_0 : i32, i32
  }
  func.func @transform_1(%arg0: i32, %arg1: i32) -> (i32, i32, i32) {
    %c1_i32 = arith.constant 1 : i32
    %0 = arith.muli %arg0, %c1_i32 : i32
    %1 = arith.addi %0, %arg1 : i32
    %c0_i32 = arith.constant 0 : i32
    %c0_i32_0 = arith.constant 0 : i32
    %c0_i32_1 = arith.constant 0 : i32
    return %1, %c0_i32, %c0_i32_0 : i32, i32, i32
  }
  func.func @transform_2(%arg0: i32, %arg1: i32) -> (i32, i32, i32) {
    %c1_i32 = arith.constant 1 : i32
    %0 = arith.muli %arg0, %c1_i32 : i32
    %1 = arith.addi %0, %arg1 : i32
    %c0_i32 = arith.constant 0 : i32
    %c0_i32_0 = arith.constant 0 : i32
    %c0_i32_1 = arith.constant 0 : i32
    return %1, %c0_i32, %c0_i32_0 : i32, i32, i32
  }
  func.func @transform_3(%arg0: i32, %arg1: i32) -> (i32, i32, i32) {
    %c0_i32 = arith.constant 0 : i32
    %c0_i32_0 = arith.constant 0 : i32
    %c0_i32_1 = arith.constant 0 : i32
    return %arg0, %c0_i32, %c0_i32_0 : i32, i32, i32
  }
}

</mosaic_0001>

<llo_original>
// kernel: tpu_custom_call.1
$region0: #{tpu_custom_call.1}
  #allocation0 [shape = 'u32[]', space=smem, size = 0x4, offset = 0x4, fixed_abs, tag = 'smem constant byte address 0x4 - core index']
  #allocation1 [shape = 'u32[144,128]{1,0:T(1,128)}', space=vmem, size = 0x12000, scoped, tag = 'internal scratch']
  %s0 = inlined_call_operand.vmem [shape: bf16[16,8], index: 0, kind: input, shape index: {}]
  %s1 = inlined_call_operand.hbm [shape: f32[2,8,16], index: 1, kind: input, shape index: {}]
  %s2 = inlined_call_operand.hbm [shape: f32[2,8,8], index: 2, kind: output, shape index: {0}]
  %s3 = inlined_call_operand.hbm [shape: f32[1,8,16], index: 3, kind: output, shape index: {1}]
  %4 = xla_tuple %s2, %s3
  %s5 = sld [smem:[#allocation0]]
  $region34: #{tpu_custom_call.1} parent=0
    _
  %s7 = ssub.s32 1, %s5
  %s8 = scalar_select 0, %s7, %s5
  $region1: #{tpu_custom_call.1} parent=0
    #allocation2 [shape = 'u8[8192]{0}', space=vmem, size = 0x2000, scoped, tag = 'input window, operand 1, single buffered']
    #allocation3 [shape = 's32[1]{0}', space=sflag, size = 0x4, scoped, tag = 'scoped memory for tpu_custom_call.1']
    #allocation4 [shape = 's32[1]{0}', space=sflag, size = 0x4, scoped, tag = 'scoped memory for tpu_custom_call.1']
    #allocation5 [shape = 'u8[8192]{0}', space=vmem, size = 0x2000, scoped, tag = 'output window, operand 0, single buffered']
    #allocation6 [shape = 'u8[4096]{0}', space=vmem, size = 0x1000, scoped, tag = 'output window, operand 1, single buffered']
    #allocation7 [shape = 's32[1]{0}', space=sflag, size = 0x4, scoped, tag = 'scoped memory for tpu_custom_call.1']
    %9 = vsyncpa [#allocation3], 0
    %10 = vsyncpa [#allocation4], 0
    %11 = vsyncpa [#allocation7], 0
    // Predicated region
    $region2: #{tpu_custom_call.1} parent=1 // pred_check
      _
    $region3: #{tpu_custom_call.1} parent=1 // pred_check_branch
      %13 = sbr.rel (0) target = $region5
    $region4: #{tpu_custom_call.1} parent=1 // pred_region
      _
    $region5: #{tpu_custom_call.1} parent=1 // pred_fallthru
      _
    // Predicated region
    $region6: #{tpu_custom_call.1} parent=1 // pred_check
      _
    $region7: #{tpu_custom_call.1} parent=1 // pred_check_branch
      %15 = sbr.rel (0) target = $region9
    $region8: #{tpu_custom_call.1} parent=1 // pred_region
      %s16 = sadd.s32 0, 0
      %s17 = smul.u32 2, %s16
      %s19 = ssub.s32 256, 256
      %20 = vsyncadd [#allocation3], %s19
      %s21 = smul.addr %s17, 128
      %s22 = scalar_lea.hbm %s1, %s21
      %s23 = sshll.u32 [#allocation2], 4
      %s24 = int_to_ptr.vmem [resolvable:$true] %s23
      %29 = dma.hbm_to_vmem [thread:$0]  %s22, 256, %s24, [#allocation3], 128, 128, 8
    $region9: #{tpu_custom_call.1} parent=1 // pred_fallthru
      _
    // Predicated region
    $region10: #{tpu_custom_call.1} parent=1 // pred_check
      _
    $region11: #{tpu_custom_call.1} parent=1 // pred_check_branch
      %31 = sbr.rel (0) target = $region13
    $region12: #{tpu_custom_call.1} parent=1 // pred_region
      %32 = dma.done [#allocation3], 256
    $region13: #{tpu_custom_call.1} parent=1 // pred_fallthru
      _
    %s33 = sadd.s32 0, 0
    %s34 = smul.u32 2, %s33
    %s35 = sadd.s32 0, 0
    %s36 = smul.u32 2, %s35
    %p38 = scmp.eq.s32.totalorder 0, 0
    // Predicated region
    $region14: #{tpu_custom_call.1} parent=1 // pred_check
      %p39 = pneg %p38
    $region15: #{tpu_custom_call.1} parent=1 // pred_check_branch
      %41 = sbr.rel (%p39) target = $region17
    $region16: #{tpu_custom_call.1} parent=1 // pred_region
      %vm42 = vcmask 130048
      %43 = vst.msk [vmem:[#allocation6] sm:$0xff] %vm42, 0.0
    $region17: #{tpu_custom_call.1} parent=1 // pred_fallthru
      _
    %v44 = vld [vmem:[#allocation2] sm:$0xff]
    %v45 = vld [vmem:[#allocation2 + $0x8] sm:$0xff]
    %v46 = vmul.f32 %v44, %v44
    %v47 = vmul.f32 %v45, %v45
    %vm48 = vcmask 130048
    %v49 = vsel %vm48, %v46, 0.0
    %50 = vadd.xlane.f32.xlu0 %v49
    %v51 = vpop.xlane.xlu0 %50
    %v52 = vsel %vm48, %v47, 0.0
    %53 = vadd.xlane.f32.xlu0 %v52
    %v54 = vpop.xlane.xlu0 %53
    %v55 = vadd.f32 %v51, 1e-12
    %v56 = vadd.f32 %v54, 1e-12
    %v57 = vrsqrt.pop %v55
    %v58 = vrsqrt.pop %v56
    %v59 = vmul.f32 %v44, %v57
    %v60 = vmul.f32 %v45, %v58
    %v61 = vpack.c.bf16 %v59, %v59
    %v62 = vpack.c.bf16 %v60, %v60
    %v63 = vld [vmem:[%s0] sm:$0xf]
    %v64 = vld [vmem:[%s0 + $0x4] sm:$0xf]
    %v67 = vunpack.c.l.b16 %v61
    %v68 = vunpack.c.l.b16 %v62
    %v69 = vpack.c.b16 %v68, %v67
    %v72 = vunpack.c.l.b16 %v63
    %v73 = vunpack.c.l.b16 %v64
    %v74 = vpack.c.b16 %v73, %v72
    %v77 = vsel %vm48, %v69, 0
    %79 = vmatprep.subr.bf16.mxu0 0
    %80 = vmatpush1.bf16.msra.mxu0 %v74
    %81 = vmatprep.subr.bf16.mxu0 0
    %82 = vmatpush1.bf16.msra.mxu0 0
    %83 = vmatprep.subr.bf16.mxu0 0
    %84 = vmatpush1.bf16.msra.mxu0 0
    %85 = vmatprep.subr.bf16.mxu0 0
    %86 = vmatpush1.bf16.msra.mxu0 0
    %87 = vmatprep.subr.bf16.mxu0 0
    %88 = vmatpush1.bf16.msra.mxu0 0
    %89 = vmatprep.subr.bf16.mxu0 0
    %90 = vmatpush1.bf16.msra.mxu0 0
    %91 = vmatprep.subr.bf16.mxu0 0
    %92 = vmatpush1.bf16.msra.mxu0 0
    %93 = vmatprep.subr.bf16.mxu0 0
    %94 = vmatpush1.bf16.msra.mxu0 0
    %95 = vmatprep.subr.bf16.mxu0 0
    %96 = vmatpush1.bf16.msra.mxu0 0
    %97 = vmatprep.subr.bf16.mxu0 0
    %98 = vmatpush1.bf16.msra.mxu0 0
    %99 = vmatprep.subr.bf16.mxu0 0
    %100 = vmatpush1.bf16.msra.mxu0 0
    %101 = vmatprep.subr.bf16.mxu0 0
    %102 = vmatpush1.bf16.msra.mxu0 0
    %103 = vmatprep.subr.bf16.mxu0 0
    %104 = vmatpush1.bf16.msra.mxu0 0
    %105 = vmatprep.subr.bf16.mxu0 0
    %106 = vmatpush1.bf16.msra.mxu0 0
    %107 = vmatprep.subr.bf16.mxu0 0
    %108 = vmatpush1.bf16.msra.mxu0 0
    %109 = vmatprep.subr.bf16.mxu0 0
    %110 = vmatpush1.bf16.msra.mxu0 0
    %111 = vmatprep.mubr.bf16.mxu0 0
    %112 = vmatmul.mubr.bf16.gmra.mrb[0].mxu0 %v77
    %v113 = vpop.f32.mrb[0].mxu0
    %v114 = vadd.f32 0.0, %v113
    %v115 = vpop.f32.mrb[0].mxu0
    %v116 = vpop.f32.mrb[0].mxu0
    %v117 = vadd.f32 0.0, %v116
    %v118 = vpop.f32.mrb[0].mxu0
    %119 = vdwg.mxu0
    %v120 = vmul.f32 %v114, 1.442695
    %v121 = vpow.pop %v120
    %v122 = vmul.f32 %v117, 1.442695
    %v123 = vpow.pop %v122
    %vm124 = vcmask 64512
    %v125 = vsel %vm124, %v121, 0.0
    %126 = vadd.xlane.f32.xlu0 %v125
    %v127 = vpop.xlane.xlu0 %126
    %v128 = vsel %vm124, %v123, 0.0
    %129 = vadd.xlane.f32.xlu0 %v128
    %v130 = vpop.xlane.xlu0 %129
    %v131 = vrcp.pop %v127
    %v132 = vrcp.pop %v130
    %v133 = vmul.f32 %v121, %v131
    %v134 = vmul.f32 %v123, %v132
    %135 = vst.msk [vmem:[#allocation5] sm:$0xff] %vm124, %v133
    %136 = vst.msk [vmem:[#allocation5 + $0x8] sm:$0xff] %vm124, %v134
    %v137 = vpack.c.bf16 %v44, %v44
    %v138 = vpack.c.bf16 %v45, %v45
    %v139 = vpack.c.bf16 %v133, %v133
    %v140 = vpack.c.bf16 %v134, %v134
    %v142 = vsel %vm124, %v140, 0
    %vm144 = vcmask 1043456
    %v146 = vsel %vm144, %v138, 0
    %148 = vmatprep.subr.bf16.mxu0 0
    %149 = vmatpush1.bf16.msra.mxu0 %v146
    %150 = vmatprep.subr.bf16.mxu0 0
    %151 = vmatpush1.bf16.msra.mxu0 0
    %152 = vmatprep.subr.bf16.mxu0 0
    %153 = vmatpush1.bf16.msra.mxu0 0
    %154 = vmatprep.subr.bf16.mxu0 0
    %155 = vmatpush1.bf16.msra.mxu0 0
    %156 = vmatprep.subr.bf16.mxu0 0
    %157 = vmatpush1.bf16.msra.mxu0 0
    %158 = vmatprep.subr.bf16.mxu0 0
    %159 = vmatpush1.bf16.msra.mxu0 0
    %160 = vmatprep.subr.bf16.mxu0 0
    %161 = vmatpush1.bf16.msra.mxu0 0
    %162 = vmatprep.subr.bf16.mxu0 0
    %163 = vmatpush1.bf16.msra.mxu0 0
    %164 = vmatprep.subr.bf16.mxu0 0
    %165 = vmatpush1.bf16.msra.mxu0 0
    %166 = vmatprep.subr.bf16.mxu0 0
    %167 = vmatpush1.bf16.msra.mxu0 0
    %168 = vmatprep.subr.bf16.mxu0 0
    %169 = vmatpush1.bf16.msra.mxu0 0
    %170 = vmatprep.subr.bf16.mxu0 0
    %171 = vmatpush1.bf16.msra.mxu0 0
    %172 = vmatprep.subr.bf16.mxu0 0
    %173 = vmatpush1.bf16.msra.mxu0 0
    %174 = vmatprep.subr.bf16.mxu0 0
    %175 = vmatpush1.bf16.msra.mxu0 0
    %176 = vmatprep.subr.bf16.mxu0 0
    %177 = vmatpush1.bf16.msra.mxu0 0
    %178 = vmatprep.subr.bf16.mxu0 0
    %179 = vmatpush1.bf16.msra.mxu0 0
    %180 = vmatprep.mubr.bf16.mxu0 0
    %181 = vmatmul.mubr.bf16.gmra.mrb[0].mxu0 %v142
    %v182 = vpop.f32.mrb[0].mxu0
    %v183 = vadd.f32 0.0, %v182
    %v184 = vpop.f32.mrb[0].mxu0
    %v185 = vpop.f32.mrb[0].mxu0
    %v186 = vpop.f32.mrb[0].mxu0
    %187 = vdwg.mxu0
    %v189 = vsel %vm124, %v139, 0
    %v192 = vsel %vm144, %v137, 0
    %194 = vmatprep.subr.bf16.mxu0 0
    %195 = vmatpush1.bf16.msra.mxu0 %v192
    %196 = vmatprep.subr.bf16.mxu0 0
    %197 = vmatpush1.bf16.msra.mxu0 0
    %198 = vmatprep.subr.bf16.mxu0 0
    %199 = vmatpush1.bf16.msra.mxu0 0
    %200 = vmatprep.subr.bf16.mxu0 0
    %201 = vmatpush1.bf16.msra.mxu0 0
    %202 = vmatprep.subr.bf16.mxu0 0
    %203 = vmatpush1.bf16.msra.mxu0 0
    %204 = vmatprep.subr.bf16.mxu0 0
    %205 = vmatpush1.bf16.msra.mxu0 0
    %206 = vmatprep.subr.bf16.mxu0 0
    %207 = vmatpush1.bf16.msra.mxu0 0
    %208 = vmatprep.subr.bf16.mxu0 0
    %209 = vmatpush1.bf16.msra.mxu0 0
    %210 = vmatprep.subr.bf16.mxu0 0
    %211 = vmatpush1.bf16.msra.mxu0 0
    %212 = vmatprep.subr.bf16.mxu0 0
    %213 = vmatpush1.bf16.msra.mxu0 0
    %214 = vmatprep.subr.bf16.mxu0 0
    %215 = vmatpush1.bf16.msra.mxu0 0
    %216 = vmatprep.subr.bf16.mxu0 0
    %217 = vmatpush1.bf16.msra.mxu0 0
    %218 = vmatprep.subr.bf16.mxu0 0
    %219 = vmatpush1.bf16.msra.mxu0 0
    %220 = vmatprep.subr.bf16.mxu0 0
    %221 = vmatpush1.bf16.msra.mxu0 0
    %222 = vmatprep.subr.bf16.mxu0 0
    %223 = vmatpush1.bf16.msra.mxu0 0
    %224 = vmatprep.subr.bf16.mxu0 0
    %225 = vmatpush1.bf16.msra.mxu0 0
    %226 = vmatprep.mubr.bf16.mxu0 0
    %227 = vmatmul.mubr.bf16.gmra.mrb[0].mxu0 %v189
    %v228 = vpop.f32.mrb[0].mxu0
    %v229 = vadd.f32 %v183, %v228
    %v230 = vpop.f32.mrb[0].mxu0
    %v231 = vpop.f32.mrb[0].mxu0
    %v232 = vpop.f32.mrb[0].mxu0
    %233 = vdwg.mxu0
    %v234 = vld [vmem:[#allocation6] sm:$0xff]
    %v235 = vadd.f32 %v234, %v229
    %236 = vst.msk [vmem:[#allocation6] sm:$0xff] %vm48, %v235
    // Predicated region
    $region18: #{tpu_custom_call.1} parent=1 // pred_check
      _
    $region19: #{tpu_custom_call.1} parent=1 // pred_check_branch
      %238 = sbr.rel (0) target = $region21
    $region20: #{tpu_custom_call.1} parent=1 // pred_region
      %s239 = sadd.s32 0, 0
      %s240 = smul.u32 2, %s239
      %s242 = ssub.s32 256, 256
      %243 = vsyncadd [#allocation4], %s242
      %s244 = smul.addr %s240, 128
      %s245 = scalar_lea.hbm %s2, %s244
      %s246 = sshll.u32 [#allocation5], 4
      %s247 = int_to_ptr.vmem [resolvable:$true] %s246
      %252 = dma.vmem_to_hbm [thread:$0]  %s247, 256, %s245, [#allocation4], 128, 128, 8
    $region21: #{tpu_custom_call.1} parent=1 // pred_fallthru
      _
    // Predicated region
    $region22: #{tpu_custom_call.1} parent=1 // pred_check
      _
    $region23: #{tpu_custom_call.1} parent=1 // pred_check_branch
      %254 = sbr.rel (0) target = $region25
    $region24: #{tpu_custom_call.1} parent=1 // pred_region
      %s256 = ssub.s32 128, 128
      %257 = vsyncadd [#allocation7], %s256
      %s259 = sshll.u32 [#allocation6], 4
      %s260 = int_to_ptr.vmem [resolvable:$true] %s259
      %262 = dma.vmem_to_hbm [thread:$0]  %s260, 128, %s3, [#allocation7]
    $region25: #{tpu_custom_call.1} parent=1 // pred_fallthru
      _
    // Predicated region
    $region26: #{tpu_custom_call.1} parent=1 // pred_check
      _
    $region27: #{tpu_custom_call.1} parent=1 // pred_check_branch
      %264 = sbr.rel (0) target = $region29
    $region28: #{tpu_custom_call.1} parent=1 // pred_region
      %265 = dma.done [#allocation4], 256
    $region29: #{tpu_custom_call.1} parent=1 // pred_fallthru
      _
    // Predicated region
    $region30: #{tpu_custom_call.1} parent=1 // pred_check
      _
    $region31: #{tpu_custom_call.1} parent=1 // pred_check_branch
      %267 = sbr.rel (0) target = $region33
    $region32: #{tpu_custom_call.1} parent=1 // pred_region
      %268 = dma.done [#allocation7], 128
    $region33: #{tpu_custom_call.1} parent=1 // pred_fallthru
      _
    %269 = vsyncpa [#allocation3], 1
    %270 = vsyncpa [#allocation4], 1
    %271 = vsyncpa [#allocation7], 1

</llo_original>
